<compile_context>
chip_gen: v7x
topology: tpu7x:2x2x1
jax: 0.10.0
libtpu: 0.0.40
codegen_flags: <defaults>
</compile_context>

<pallas_src>
import jax
import jax.numpy as jnp
from jax.experimental import pallas as pl
from jax.experimental.pallas import tpu as pltpu


_SQRT_HALF = 0.7071067811865476
_LANE = 128


def _round_up(v, m):
    return pl.cdiv(v, m) * m


def _contract_f32(w, x):
    """(M, K) @ (K, N) -> (M, N) with float32 accumulation.

    For contractions that would leave the MXU nearly empty (tiny K, or tiny M
    with modest K) we issue VPU broadcast-MACs over the wide lane axis instead:
    the systolic fill/drain latency would dominate and the MXU slot is freed.
    """
    M, K = w.shape
    if K <= 8 or (M <= 8 and K <= 32):
        wf = w.astype(jnp.float32)
        xf = x.astype(jnp.float32)
        acc = wf[:, 0:1] * xf[0:1, :]
        for c in range(1, K):
            acc = acc + wf[:, c:c + 1] * xf[c:c + 1, :]
        return acc
    # MXU path: feed operands in the weight dtype (bf16 weights -> bf16
    # activations; f32 stays f32), accumulate in f32 on the MXU.
    rhs = x if w.dtype == jnp.float32 else x.astype(w.dtype)
    return jnp.dot(w, rhs, preferred_element_type=jnp.float32)


def _mlp_kernel(x_ref, w1_ref, b1_ref, w2_ref, b2_ref, o_ref):
    # x_ref : (C_in, TN)   channel-major column tile, TN on the 128-lane axis
    # w1_ref: (H, C_in)    b1_ref: (H, 1)
    # w2_ref: (C_out, H)   b2_ref: (C_out, 1)
    # o_ref : (C_out, TN)
    x = x_ref[...]

    # fc1 (1x1 conv) + exact (erf) GELU, matching nn.GELU() default.
    h = _contract_f32(w1_ref[...], x)
    h = h + b1_ref[...].astype(jnp.float32)
    h = 0.5 * h * (1.0 + jax.lax.erf(h * jnp.float32(_SQRT_HALF)))

    # fc2 (1x1 conv)
    y = _contract_f32(w2_ref[...], h)
    y = y + b2_ref[...].astype(jnp.float32)

    # TODO(synk): dropout with p=0.0 is an identity; nonzero p not implemented.
    o_ref[...] = y.astype(o_ref.dtype)


def _vmem_budget_bytes():
    """Generation-aware VMEM budget: ~75% of physical, capped at 100 MiB.

    v7x (64 MiB/TensorCore) -> ~48 MiB, leaving compiler-scratch headroom.
    v5e/v6e (128 MiB)       -> ~96 MiB (well above the 16/32 MiB scoped defaults).
    Falls back to the conservative 64 MiB (v7x) figure if the query fails.
    """
    phys = 64 << 20
    try:
        info = pltpu.get_tpu_info()
        for attr in ("vmem_capacity_bytes", "vmem_size_bytes", "vmem_bytes"):
            v = getattr(info, attr, None)
            if v:
                phys = int(v)
                break
    except Exception:
        pass
    return min(int(phys) * 3 // 4, 100 << 20)


def mlp_forward(x_ncl, w1, b1, w2, b2):
    """x_ncl: (B, C_in, L).  w1: (H, C_in), b1: (H,), w2: (C_out, H), b2: (C_out,)."""
    B, C_in, L = x_ncl.shape
    H = w1.shape[0]
    C_out = w2.shape[0]
    out_dtype = x_ncl.dtype

    itemsize = jnp.dtype(x_ncl.dtype).itemsize
    w_itemsize = jnp.dtype(w1.dtype).itemsize
    w_bytes = (w1.size + b1.size + w2.size + b2.size) * w_itemsize

    budget = _vmem_budget_bytes()
    headroom = 2 << 20
    # VMEM bytes per output column (lane): double-buffered x/out tiles plus the
    # live f32 intermediates (h, GELU temporaries, y).
    per_col = (2 * C_in * itemsize + 2 * C_out * itemsize
               + 3 * H * 4 + 2 * C_out * 4)
    # Weights counted double-buffered (conservative; their constant index_map
    # means they are actually fetched only once and stay resident).
    avail = budget - 2 * w_bytes - headroom
    max_tile = max(_LANE, min(8192, (avail // per_col) // _LANE * _LANE))

    # Fold the batch into the column (lane) axis when one batch's columns would
    # badly under-fill a tile: wide lane-dense tiles amortize per-step overhead.
    fold = (B > 1) and (_round_up(L, _LANE) * 2 <= max_tile)
    if fold:
        x_in = jnp.transpose(x_ncl, (1, 0, 2)).reshape(1, C_in, B * L)
        B_eff, N = 1, B * L
    else:
        x_in, B_eff, N = x_ncl, B, L

    # Balanced column tiles with minimal padding: smallest tile count that fits
    # the VMEM budget, then split N evenly in 128-lane units.
    n_lanes = pl.cdiv(N, _LANE)
    tile_lanes = min(max_tile // _LANE, n_lanes)
    n_tiles = pl.cdiv(n_lanes, tile_lanes)
    tile_lanes = pl.cdiv(n_lanes, n_tiles)
    tile_n = tile_lanes * _LANE
    N_pad = n_tiles * tile_n
    if N_pad != N:
        x_in = jnp.pad(x_in, ((0, 0), (0, 0), (0, N_pad - N)))

    b1_c = b1.reshape(H, 1)
    b2_c = b2.reshape(C_out, 1)

    # Put the grid axis with more steps first so megacore (v7x: 2 TCs) splits it.
    if n_tiles >= B_eff:
        grid = (n_tiles, B_eff)
        xo_map = lambda j, b: (b, 0, j)
    else:
        grid = (B_eff, n_tiles)
        xo_map = lambda b, j: (b, 0, j)
    w_map = lambda i, j: (0, 0)

    cost = pl.CostEstimate(
        flops=2 * B * L * (C_in * H + H * C_out),
        transcendentals=B * L * H,
        bytes_accessed=B * L * (C_in + C_out) * itemsize + w_bytes,
    )

    # Actual per-step footprint (same terms the tile-size derivation used).
    need = (2 * (C_in + C_out) * tile_n * itemsize
            + 2 * w_bytes
            + (3 * H + 2 * C_out) * tile_n * 4
            + headroom)
    vmem_limit = int(min(budget, max(need, 16 << 20)))

    out = pl.pallas_call(
        _mlp_kernel,
        out_shape=jax.ShapeDtypeStruct((B_eff, C_out, N_pad), out_dtype),
        grid_spec=pltpu.PrefetchScalarGridSpec(
            num_scalar_prefetch=0,
            grid=grid,
            in_specs=[
                pl.BlockSpec((None, C_in, tile_n), xo_map),
                pl.BlockSpec((H, C_in), w_map),
                pl.BlockSpec((H, 1), w_map),
                pl.BlockSpec((C_out, H), w_map),
                pl.BlockSpec((C_out, 1), w_map),
            ],
            out_specs=pl.BlockSpec((None, C_out, tile_n), xo_map),
        ),
        compiler_params=pltpu.CompilerParams(
            dimension_semantics=("parallel", "parallel"),
            vmem_limit_bytes=vmem_limit),
        cost_estimate=cost,
    )(x_in, w1, b1_c, w2, b2_c)

    out = out[:, :, :N] if N_pad != N else out
    if fold:
        out = jnp.transpose(out[0].reshape(C_out, B, L), (1, 0, 2))
    return out


def mlp_reference(x_ncl, w1, b1, w2, b2):
    """Plain-JAX reference matching PyTorch semantics (conv1d k=1 == linear)."""
    h = jnp.einsum('oc,bcl->bol', w1, x_ncl) + b1[None, :, None]
    h = 0.5 * h * (1.0 + jax.lax.erf(h / jnp.sqrt(2.0)))
    y = jnp.einsum('oh,bhl->bol', w2, h) + b2[None, :, None]
    return y


if __name__ == "__main__":
    # Small shapes consistent with the module: B=2, in_features=4, L=16, hidden=32.
    B, C_in, L = 2, 4, 16
    hidden = 32
    C_out = C_in  # out_features defaults to in_features

    key = jax.random.PRNGKey(0)
    kx, kw1, kb1, kw2, kb2 = jax.random.split(key, 5)

    x = jax.random.normal(kx, (B, C_in, L), dtype=jnp.float32)
    # Deterministic synthetic parameters (shapes follow nn.Conv1d(k=1)).
    w1 = jax.random.normal(kw1, (hidden, C_in), dtype=jnp.float32) * 0.1
    b1 = jax.random.normal(kb1, (hidden,), dtype=jnp.float32) * 0.1
    w2 = jax.random.normal(kw2, (C_out, hidden), dtype=jnp.float32) * 0.1
    b2 = jax.random.normal(kb2, (C_out,), dtype=jnp.float32) * 0.1

    y = mlp_forward(x, w1, b1, w2, b2)
    y = jax.block_until_ready(y)

    y_ref = mlp_reference(x, w1, b1, w2, b2)
    assert y.shape == (B, C_out, L), y.shape
    assert jnp.allclose(y, y_ref, atol=1e-5, rtol=1e-5), \
        float(jnp.max(jnp.abs(y - y_ref)))

    print("KERNEL_OK")
</pallas_src>

<mosaic_0001>
module attributes {stable_mosaic.version = 11 : i64} {
  func.func @_mlp_kernel(%arg0: i32, %arg1: i32, %arg2: memref<1x4x128xf32, #tpu.memory_space<vmem>>, %arg3: memref<32x4xf32, #tpu.memory_space<vmem>>, %arg4: memref<32x1xf32, #tpu.memory_space<vmem>>, %arg5: memref<4x32xf32, #tpu.memory_space<vmem>>, %arg6: memref<4x1xf32, #tpu.memory_space<vmem>>, %arg7: memref<1x4x128xf32, #tpu.memory_space<vmem>>) attributes {dimension_semantics = [#tpu.dimension_semantics<parallel>, #tpu.dimension_semantics<parallel>], iteration_bounds = array<i64: 1, 1>, scalar_prefetch = 0 : i64, scratch_operands = 0 : i64, tpu.core_type = #tpu.core_type<tc>, window_params = [{transform_indices = @transform_0, window_bounds = array<i64: 1, 4, 128>}, {pipeline_mode = #tpu.pipeline_mode<synchronous>, transform_indices = @transform_1, window_bounds = array<i64: 32, 4>}, {pipeline_mode = #tpu.pipeline_mode<synchronous>, transform_indices = @transform_2, window_bounds = array<i64: 32, 1>}, {pipeline_mode = #tpu.pipeline_mode<synchronous>, transform_indices = @transform_3, window_bounds = array<i64: 4, 32>}, {pipeline_mode = #tpu.pipeline_mode<synchronous>, transform_indices = @transform_4, window_bounds = array<i64: 4, 1>}, {transform_indices = @transform_5, window_bounds = array<i64: 1, 4, 128>}]} {
    %c0 = arith.constant 0 : index
    %c0_0 = arith.constant 0 : index
    %c0_1 = arith.constant 0 : index
    %0 = vector.load %arg2[%c0, %c0_0, %c0_1] : memref<1x4x128xf32, #tpu.memory_space<vmem>>, vector<1x4x128xf32>
    %1 = vector.shape_cast %0 : vector<1x4x128xf32> to vector<4x128xf32>
    %c0_2 = arith.constant 0 : index
    %c0_3 = arith.constant 0 : index
    %2 = vector.load %arg3[%c0_2, %c0_3] : memref<32x4xf32, #tpu.memory_space<vmem>>, vector<32x4xf32>
    %3 = vector.extract_strided_slice %2 {offsets = [0, 0], sizes = [32, 1], strides = [1, 1]} : vector<32x4xf32> to vector<32x1xf32>
    %4 = vector.extract_strided_slice %1 {offsets = [0, 0], sizes = [1, 128], strides = [1, 1]} : vector<4x128xf32> to vector<1x128xf32>
    %5 = vector.broadcast %3 : vector<32x1xf32> to vector<32x128xf32>
    %6 = vector.broadcast %4 : vector<1x128xf32> to vector<32x128xf32>
    %7 = arith.mulf %5, %6 : vector<32x128xf32>
    %8 = vector.extract_strided_slice %2 {offsets = [0, 1], sizes = [32, 1], strides = [1, 1]} : vector<32x4xf32> to vector<32x1xf32>
    %9 = vector.extract_strided_slice %1 {offsets = [1, 0], sizes = [1, 128], strides = [1, 1]} : vector<4x128xf32> to vector<1x128xf32>
    %10 = vector.broadcast %8 : vector<32x1xf32> to vector<32x128xf32>
    %11 = vector.broadcast %9 : vector<1x128xf32> to vector<32x128xf32>
    %12 = arith.mulf %10, %11 : vector<32x128xf32>
    %13 = arith.addf %7, %12 : vector<32x128xf32>
    %14 = vector.extract_strided_slice %2 {offsets = [0, 2], sizes = [32, 1], strides = [1, 1]} : vector<32x4xf32> to vector<32x1xf32>
    %15 = vector.extract_strided_slice %1 {offsets = [2, 0], sizes = [1, 128], strides = [1, 1]} : vector<4x128xf32> to vector<1x128xf32>
    %16 = vector.broadcast %14 : vector<32x1xf32> to vector<32x128xf32>
    %17 = vector.broadcast %15 : vector<1x128xf32> to vector<32x128xf32>
    %18 = arith.mulf %16, %17 : vector<32x128xf32>
    %19 = arith.addf %13, %18 : vector<32x128xf32>
    %20 = vector.extract_strided_slice %2 {offsets = [0, 3], sizes = [32, 1], strides = [1, 1]} : vector<32x4xf32> to vector<32x1xf32>
    %21 = vector.extract_strided_slice %1 {offsets = [3, 0], sizes = [1, 128], strides = [1, 1]} : vector<4x128xf32> to vector<1x128xf32>
    %22 = vector.broadcast %20 : vector<32x1xf32> to vector<32x128xf32>
    %23 = vector.broadcast %21 : vector<1x128xf32> to vector<32x128xf32>
    %24 = arith.mulf %22, %23 : vector<32x128xf32>
    %25 = arith.addf %19, %24 : vector<32x128xf32>
    %c0_4 = arith.constant 0 : index
    %c0_5 = arith.constant 0 : index
    %26 = vector.load %arg4[%c0_4, %c0_5] : memref<32x1xf32, #tpu.memory_space<vmem>>, vector<32x1xf32>
    %27 = vector.broadcast %26 : vector<32x1xf32> to vector<32x128xf32>
    %28 = arith.addf %25, %27 : vector<32x128xf32>
    %cst = arith.constant 5.000000e-01 : f32
    %29 = vector.broadcast %cst : f32 to vector<32x128xf32>
    %30 = arith.mulf %29, %28 : vector<32x128xf32>
    %cst_6 = arith.constant 0.707106769 : f32
    %31 = vector.broadcast %cst_6 : f32 to vector<32x128xf32>
    %32 = arith.mulf %28, %31 : vector<32x128xf32>
    %33 = math.erf %32 : vector<32x128xf32>
    %cst_7 = arith.constant 1.000000e+00 : f32
    %34 = vector.broadcast %cst_7 : f32 to vector<32x128xf32>
    %35 = arith.addf %34, %33 : vector<32x128xf32>
    %36 = arith.mulf %30, %35 : vector<32x128xf32>
    %c0_8 = arith.constant 0 : index
    %c0_9 = arith.constant 0 : index
    %37 = vector.load %arg5[%c0_8, %c0_9] : memref<4x32xf32, #tpu.memory_space<vmem>>, vector<4x32xf32>
    %38 = vector.extract_strided_slice %37 {offsets = [0, 0], sizes = [4, 1], strides = [1, 1]} : vector<4x32xf32> to vector<4x1xf32>
    %39 = vector.extract_strided_slice %36 {offsets = [0, 0], sizes = [1, 128], strides = [1, 1]} : vector<32x128xf32> to vector<1x128xf32>
    %40 = vector.broadcast %38 : vector<4x1xf32> to vector<4x128xf32>
    %41 = vector.broadcast %39 : vector<1x128xf32> to vector<4x128xf32>
    %42 = arith.mulf %40, %41 : vector<4x128xf32>
    %43 = vector.extract_strided_slice %37 {offsets = [0, 1], sizes = [4, 1], strides = [1, 1]} : vector<4x32xf32> to vector<4x1xf32>
    %44 = vector.extract_strided_slice %36 {offsets = [1, 0], sizes = [1, 128], strides = [1, 1]} : vector<32x128xf32> to vector<1x128xf32>
    %45 = vector.broadcast %43 : vector<4x1xf32> to vector<4x128xf32>
    %46 = vector.broadcast %44 : vector<1x128xf32> to vector<4x128xf32>
    %47 = arith.mulf %45, %46 : vector<4x128xf32>
    %48 = arith.addf %42, %47 : vector<4x128xf32>
    %49 = vector.extract_strided_slice %37 {offsets = [0, 2], sizes = [4, 1], strides = [1, 1]} : vector<4x32xf32> to vector<4x1xf32>
    %50 = vector.extract_strided_slice %36 {offsets = [2, 0], sizes = [1, 128], strides = [1, 1]} : vector<32x128xf32> to vector<1x128xf32>
    %51 = vector.broadcast %49 : vector<4x1xf32> to vector<4x128xf32>
    %52 = vector.broadcast %50 : vector<1x128xf32> to vector<4x128xf32>
    %53 = arith.mulf %51, %52 : vector<4x128xf32>
    %54 = arith.addf %48, %53 : vector<4x128xf32>
    %55 = vector.extract_strided_slice %37 {offsets = [0, 3], sizes = [4, 1], strides = [1, 1]} : vector<4x32xf32> to vector<4x1xf32>
    %56 = vector.extract_strided_slice %36 {offsets = [3, 0], sizes = [1, 128], strides = [1, 1]} : vector<32x128xf32> to vector<1x128xf32>
    %57 = vector.broadcast %55 : vector<4x1xf32> to vector<4x128xf32>
    %58 = vector.broadcast %56 : vector<1x128xf32> to vector<4x128xf32>
    %59 = arith.mulf %57, %58 : vector<4x128xf32>
    %60 = arith.addf %54, %59 : vector<4x128xf32>
    %61 = vector.extract_strided_slice %37 {offsets = [0, 4], sizes = [4, 1], strides = [1, 1]} : vector<4x32xf32> to vector<4x1xf32>
    %62 = vector.extract_strided_slice %36 {offsets = [4, 0], sizes = [1, 128], strides = [1, 1]} : vector<32x128xf32> to vector<1x128xf32>
    %63 = vector.broadcast %61 : vector<4x1xf32> to vector<4x128xf32>
    %64 = vector.broadcast %62 : vector<1x128xf32> to vector<4x128xf32>
    %65 = arith.mulf %63, %64 : vector<4x128xf32>
    %66 = arith.addf %60, %65 : vector<4x128xf32>
    %67 = vector.extract_strided_slice %37 {offsets = [0, 5], sizes = [4, 1], strides = [1, 1]} : vector<4x32xf32> to vector<4x1xf32>
    %68 = vector.extract_strided_slice %36 {offsets = [5, 0], sizes = [1, 128], strides = [1, 1]} : vector<32x128xf32> to vector<1x128xf32>
    %69 = vector.broadcast %67 : vector<4x1xf32> to vector<4x128xf32>
    %70 = vector.broadcast %68 : vector<1x128xf32> to vector<4x128xf32>
    %71 = arith.mulf %69, %70 : vector<4x128xf32>
    %72 = arith.addf %66, %71 : vector<4x128xf32>
    %73 = vector.extract_strided_slice %37 {offsets = [0, 6], sizes = [4, 1], strides = [1, 1]} : vector<4x32xf32> to vector<4x1xf32>
    %74 = vector.extract_strided_slice %36 {offsets = [6, 0], sizes = [1, 128], strides = [1, 1]} : vector<32x128xf32> to vector<1x128xf32>
    %75 = vector.broadcast %73 : vector<4x1xf32> to vector<4x128xf32>
    %76 = vector.broadcast %74 : vector<1x128xf32> to vector<4x128xf32>
    %77 = arith.mulf %75, %76 : vector<4x128xf32>
    %78 = arith.addf %72, %77 : vector<4x128xf32>
    %79 = vector.extract_strided_slice %37 {offsets = [0, 7], sizes = [4, 1], strides = [1, 1]} : vector<4x32xf32> to vector<4x1xf32>
    %80 = vector.extract_strided_slice %36 {offsets = [7, 0], sizes = [1, 128], strides = [1, 1]} : vector<32x128xf32> to vector<1x128xf32>
    %81 = vector.broadcast %79 : vector<4x1xf32> to vector<4x128xf32>
    %82 = vector.broadcast %80 : vector<1x128xf32> to vector<4x128xf32>
    %83 = arith.mulf %81, %82 : vector<4x128xf32>
    %84 = arith.addf %78, %83 : vector<4x128xf32>
    %85 = vector.extract_strided_slice %37 {offsets = [0, 8], sizes = [4, 1], strides = [1, 1]} : vector<4x32xf32> to vector<4x1xf32>
    %86 = vector.extract_strided_slice %36 {offsets = [8, 0], sizes = [1, 128], strides = [1, 1]} : vector<32x128xf32> to vector<1x128xf32>
    %87 = vector.broadcast %85 : vector<4x1xf32> to vector<4x128xf32>
    %88 = vector.broadcast %86 : vector<1x128xf32> to vector<4x128xf32>
    %89 = arith.mulf %87, %88 : vector<4x128xf32>
    %90 = arith.addf %84, %89 : vector<4x128xf32>
    %91 = vector.extract_strided_slice %37 {offsets = [0, 9], sizes = [4, 1], strides = [1, 1]} : vector<4x32xf32> to vector<4x1xf32>
    %92 = vector.extract_strided_slice %36 {offsets = [9, 0], sizes = [1, 128], strides = [1, 1]} : vector<32x128xf32> to vector<1x128xf32>
    %93 = vector.broadcast %91 : vector<4x1xf32> to vector<4x128xf32>
    %94 = vector.broadcast %92 : vector<1x128xf32> to vector<4x128xf32>
    %95 = arith.mulf %93, %94 : vector<4x128xf32>
    %96 = arith.addf %90, %95 : vector<4x128xf32>
    %97 = vector.extract_strided_slice %37 {offsets = [0, 10], sizes = [4, 1], strides = [1, 1]} : vector<4x32xf32> to vector<4x1xf32>
    %98 = vector.extract_strided_slice %36 {offsets = [10, 0], sizes = [1, 128], strides = [1, 1]} : vector<32x128xf32> to vector<1x128xf32>
    %99 = vector.broadcast %97 : vector<4x1xf32> to vector<4x128xf32>
    %100 = vector.broadcast %98 : vector<1x128xf32> to vector<4x128xf32>
    %101 = arith.mulf %99, %100 : vector<4x128xf32>
    %102 = arith.addf %96, %101 : vector<4x128xf32>
    %103 = vector.extract_strided_slice %37 {offsets = [0, 11], sizes = [4, 1], strides = [1, 1]} : vector<4x32xf32> to vector<4x1xf32>
    %104 = vector.extract_strided_slice %36 {offsets = [11, 0], sizes = [1, 128], strides = [1, 1]} : vector<32x128xf32> to vector<1x128xf32>
    %105 = vector.broadcast %103 : vector<4x1xf32> to vector<4x128xf32>
    %106 = vector.broadcast %104 : vector<1x128xf32> to vector<4x128xf32>
    %107 = arith.mulf %105, %106 : vector<4x128xf32>
    %108 = arith.addf %102, %107 : vector<4x128xf32>
    %109 = vector.extract_strided_slice %37 {offsets = [0, 12], sizes = [4, 1], strides = [1, 1]} : vector<4x32xf32> to vector<4x1xf32>
    %110 = vector.extract_strided_slice %36 {offsets = [12, 0], sizes = [1, 128], strides = [1, 1]} : vector<32x128xf32> to vector<1x128xf32>
    %111 = vector.broadcast %109 : vector<4x1xf32> to vector<4x128xf32>
    %112 = vector.broadcast %110 : vector<1x128xf32> to vector<4x128xf32>
    %113 = arith.mulf %111, %112 : vector<4x128xf32>
    %114 = arith.addf %108, %113 : vector<4x128xf32>
    %115 = vector.extract_strided_slice %37 {offsets = [0, 13], sizes = [4, 1], strides = [1, 1]} : vector<4x32xf32> to vector<4x1xf32>
    %116 = vector.extract_strided_slice %36 {offsets = [13, 0], sizes = [1, 128], strides = [1, 1]} : vector<32x128xf32> to vector<1x128xf32>
    %117 = vector.broadcast %115 : vector<4x1xf32> to vector<4x128xf32>
    %118 = vector.broadcast %116 : vector<1x128xf32> to vector<4x128xf32>
    %119 = arith.mulf %117, %118 : vector<4x128xf32>
    %120 = arith.addf %114, %119 : vector<4x128xf32>
    %121 = vector.extract_strided_slice %37 {offsets = [0, 14], sizes = [4, 1], strides = [1, 1]} : vector<4x32xf32> to vector<4x1xf32>
    %122 = vector.extract_strided_slice %36 {offsets = [14, 0], sizes = [1, 128], strides = [1, 1]} : vector<32x128xf32> to vector<1x128xf32>
    %123 = vector.broadcast %121 : vector<4x1xf32> to vector<4x128xf32>
    %124 = vector.broadcast %122 : vector<1x128xf32> to vector<4x128xf32>
    %125 = arith.mulf %123, %124 : vector<4x128xf32>
    %126 = arith.addf %120, %125 : vector<4x128xf32>
    %127 = vector.extract_strided_slice %37 {offsets = [0, 15], sizes = [4, 1], strides = [1, 1]} : vector<4x32xf32> to vector<4x1xf32>
    %128 = vector.extract_strided_slice %36 {offsets = [15, 0], sizes = [1, 128], strides = [1, 1]} : vector<32x128xf32> to vector<1x128xf32>
    %129 = vector.broadcast %127 : vector<4x1xf32> to vector<4x128xf32>
    %130 = vector.broadcast %128 : vector<1x128xf32> to vector<4x128xf32>
    %131 = arith.mulf %129, %130 : vector<4x128xf32>
    %132 = arith.addf %126, %131 : vector<4x128xf32>
    %133 = vector.extract_strided_slice %37 {offsets = [0, 16], sizes = [4, 1], strides = [1, 1]} : vector<4x32xf32> to vector<4x1xf32>
    %134 = vector.extract_strided_slice %36 {offsets = [16, 0], sizes = [1, 128], strides = [1, 1]} : vector<32x128xf32> to vector<1x128xf32>
    %135 = vector.broadcast %133 : vector<4x1xf32> to vector<4x128xf32>
    %136 = vector.broadcast %134 : vector<1x128xf32> to vector<4x128xf32>
    %137 = arith.mulf %135, %136 : vector<4x128xf32>
    %138 = arith.addf %132, %137 : vector<4x128xf32>
    %139 = vector.extract_strided_slice %37 {offsets = [0, 17], sizes = [4, 1], strides = [1, 1]} : vector<4x32xf32> to vector<4x1xf32>
    %140 = vector.extract_strided_slice %36 {offsets = [17, 0], sizes = [1, 128], strides = [1, 1]} : vector<32x128xf32> to vector<1x128xf32>
    %141 = vector.broadcast %139 : vector<4x1xf32> to vector<4x128xf32>
    %142 = vector.broadcast %140 : vector<1x128xf32> to vector<4x128xf32>
    %143 = arith.mulf %141, %142 : vector<4x128xf32>
    %144 = arith.addf %138, %143 : vector<4x128xf32>
    %145 = vector.extract_strided_slice %37 {offsets = [0, 18], sizes = [4, 1], strides = [1, 1]} : vector<4x32xf32> to vector<4x1xf32>
    %146 = vector.extract_strided_slice %36 {offsets = [18, 0], sizes = [1, 128], strides = [1, 1]} : vector<32x128xf32> to vector<1x128xf32>
    %147 = vector.broadcast %145 : vector<4x1xf32> to vector<4x128xf32>
    %148 = vector.broadcast %146 : vector<1x128xf32> to vector<4x128xf32>
    %149 = arith.mulf %147, %148 : vector<4x128xf32>
    %150 = arith.addf %144, %149 : vector<4x128xf32>
    %151 = vector.extract_strided_slice %37 {offsets = [0, 19], sizes = [4, 1], strides = [1, 1]} : vector<4x32xf32> to vector<4x1xf32>
    %152 = vector.extract_strided_slice %36 {offsets = [19, 0], sizes = [1, 128], strides = [1, 1]} : vector<32x128xf32> to vector<1x128xf32>
    %153 = vector.broadcast %151 : vector<4x1xf32> to vector<4x128xf32>
    %154 = vector.broadcast %152 : vector<1x128xf32> to vector<4x128xf32>
    %155 = arith.mulf %153, %154 : vector<4x128xf32>
    %156 = arith.addf %150, %155 : vector<4x128xf32>
    %157 = vector.extract_strided_slice %37 {offsets = [0, 20], sizes = [4, 1], strides = [1, 1]} : vector<4x32xf32> to vector<4x1xf32>
    %158 = vector.extract_strided_slice %36 {offsets = [20, 0], sizes = [1, 128], strides = [1, 1]} : vector<32x128xf32> to vector<1x128xf32>
    %159 = vector.broadcast %157 : vector<4x1xf32> to vector<4x128xf32>
    %160 = vector.broadcast %158 : vector<1x128xf32> to vector<4x128xf32>
    %161 = arith.mulf %159, %160 : vector<4x128xf32>
    %162 = arith.addf %156, %161 : vector<4x128xf32>
    %163 = vector.extract_strided_slice %37 {offsets = [0, 21], sizes = [4, 1], strides = [1, 1]} : vector<4x32xf32> to vector<4x1xf32>
    %164 = vector.extract_strided_slice %36 {offsets = [21, 0], sizes = [1, 128], strides = [1, 1]} : vector<32x128xf32> to vector<1x128xf32>
    %165 = vector.broadcast %163 : vector<4x1xf32> to vector<4x128xf32>
    %166 = vector.broadcast %164 : vector<1x128xf32> to vector<4x128xf32>
    %167 = arith.mulf %165, %166 : vector<4x128xf32>
    %168 = arith.addf %162, %167 : vector<4x128xf32>
    %169 = vector.extract_strided_slice %37 {offsets = [0, 22], sizes = [4, 1], strides = [1, 1]} : vector<4x32xf32> to vector<4x1xf32>
    %170 = vector.extract_strided_slice %36 {offsets = [22, 0], sizes = [1, 128], strides = [1, 1]} : vector<32x128xf32> to vector<1x128xf32>
    %171 = vector.broadcast %169 : vector<4x1xf32> to vector<4x128xf32>
    %172 = vector.broadcast %170 : vector<1x128xf32> to vector<4x128xf32>
    %173 = arith.mulf %171, %172 : vector<4x128xf32>
    %174 = arith.addf %168, %173 : vector<4x128xf32>
    %175 = vector.extract_strided_slice %37 {offsets = [0, 23], sizes = [4, 1], strides = [1, 1]} : vector<4x32xf32> to vector<4x1xf32>
    %176 = vector.extract_strided_slice %36 {offsets = [23, 0], sizes = [1, 128], strides = [1, 1]} : vector<32x128xf32> to vector<1x128xf32>
    %177 = vector.broadcast %175 : vector<4x1xf32> to vector<4x128xf32>
    %178 = vector.broadcast %176 : vector<1x128xf32> to vector<4x128xf32>
    %179 = arith.mulf %177, %178 : vector<4x128xf32>
    %180 = arith.addf %174, %179 : vector<4x128xf32>
    %181 = vector.extract_strided_slice %37 {offsets = [0, 24], sizes = [4, 1], strides = [1, 1]} : vector<4x32xf32> to vector<4x1xf32>
    %182 = vector.extract_strided_slice %36 {offsets = [24, 0], sizes = [1, 128], strides = [1, 1]} : vector<32x128xf32> to vector<1x128xf32>
    %183 = vector.broadcast %181 : vector<4x1xf32> to vector<4x128xf32>
    %184 = vector.broadcast %182 : vector<1x128xf32> to vector<4x128xf32>
    %185 = arith.mulf %183, %184 : vector<4x128xf32>
    %186 = arith.addf %180, %185 : vector<4x128xf32>
    %187 = vector.extract_strided_slice %37 {offsets = [0, 25], sizes = [4, 1], strides = [1, 1]} : vector<4x32xf32> to vector<4x1xf32>
    %188 = vector.extract_strided_slice %36 {offsets = [25, 0], sizes = [1, 128], strides = [1, 1]} : vector<32x128xf32> to vector<1x128xf32>
    %189 = vector.broadcast %187 : vector<4x1xf32> to vector<4x128xf32>
    %190 = vector.broadcast %188 : vector<1x128xf32> to vector<4x128xf32>
    %191 = arith.mulf %189, %190 : vector<4x128xf32>
    %192 = arith.addf %186, %191 : vector<4x128xf32>
    %193 = vector.extract_strided_slice %37 {offsets = [0, 26], sizes = [4, 1], strides = [1, 1]} : vector<4x32xf32> to vector<4x1xf32>
    %194 = vector.extract_strided_slice %36 {offsets = [26, 0], sizes = [1, 128], strides = [1, 1]} : vector<32x128xf32> to vector<1x128xf32>
    %195 = vector.broadcast %193 : vector<4x1xf32> to vector<4x128xf32>
    %196 = vector.broadcast %194 : vector<1x128xf32> to vector<4x128xf32>
    %197 = arith.mulf %195, %196 : vector<4x128xf32>
    %198 = arith.addf %192, %197 : vector<4x128xf32>
    %199 = vector.extract_strided_slice %37 {offsets = [0, 27], sizes = [4, 1], strides = [1, 1]} : vector<4x32xf32> to vector<4x1xf32>
    %200 = vector.extract_strided_slice %36 {offsets = [27, 0], sizes = [1, 128], strides = [1, 1]} : vector<32x128xf32> to vector<1x128xf32>
    %201 = vector.broadcast %199 : vector<4x1xf32> to vector<4x128xf32>
    %202 = vector.broadcast %200 : vector<1x128xf32> to vector<4x128xf32>
    %203 = arith.mulf %201, %202 : vector<4x128xf32>
    %204 = arith.addf %198, %203 : vector<4x128xf32>
    %205 = vector.extract_strided_slice %37 {offsets = [0, 28], sizes = [4, 1], strides = [1, 1]} : vector<4x32xf32> to vector<4x1xf32>
    %206 = vector.extract_strided_slice %36 {offsets = [28, 0], sizes = [1, 128], strides = [1, 1]} : vector<32x128xf32> to vector<1x128xf32>
    %207 = vector.broadcast %205 : vector<4x1xf32> to vector<4x128xf32>
    %208 = vector.broadcast %206 : vector<1x128xf32> to vector<4x128xf32>
    %209 = arith.mulf %207, %208 : vector<4x128xf32>
    %210 = arith.addf %204, %209 : vector<4x128xf32>
    %211 = vector.extract_strided_slice %37 {offsets = [0, 29], sizes = [4, 1], strides = [1, 1]} : vector<4x32xf32> to vector<4x1xf32>
    %212 = vector.extract_strided_slice %36 {offsets = [29, 0], sizes = [1, 128], strides = [1, 1]} : vector<32x128xf32> to vector<1x128xf32>
    %213 = vector.broadcast %211 : vector<4x1xf32> to vector<4x128xf32>
    %214 = vector.broadcast %212 : vector<1x128xf32> to vector<4x128xf32>
    %215 = arith.mulf %213, %214 : vector<4x128xf32>
    %216 = arith.addf %210, %215 : vector<4x128xf32>
    %217 = vector.extract_strided_slice %37 {offsets = [0, 30], sizes = [4, 1], strides = [1, 1]} : vector<4x32xf32> to vector<4x1xf32>
    %218 = vector.extract_strided_slice %36 {offsets = [30, 0], sizes = [1, 128], strides = [1, 1]} : vector<32x128xf32> to vector<1x128xf32>
    %219 = vector.broadcast %217 : vector<4x1xf32> to vector<4x128xf32>
    %220 = vector.broadcast %218 : vector<1x128xf32> to vector<4x128xf32>
    %221 = arith.mulf %219, %220 : vector<4x128xf32>
    %222 = arith.addf %216, %221 : vector<4x128xf32>
    %223 = vector.extract_strided_slice %37 {offsets = [0, 31], sizes = [4, 1], strides = [1, 1]} : vector<4x32xf32> to vector<4x1xf32>
    %224 = vector.extract_strided_slice %36 {offsets = [31, 0], sizes = [1, 128], strides = [1, 1]} : vector<32x128xf32> to vector<1x128xf32>
    %225 = vector.broadcast %223 : vector<4x1xf32> to vector<4x128xf32>
    %226 = vector.broadcast %224 : vector<1x128xf32> to vector<4x128xf32>
    %227 = arith.mulf %225, %226 : vector<4x128xf32>
    %228 = arith.addf %222, %227 : vector<4x128xf32>
    %c0_10 = arith.constant 0 : index
    %c0_11 = arith.constant 0 : index
    %229 = vector.load %arg6[%c0_10, %c0_11] : memref<4x1xf32, #tpu.memory_space<vmem>>, vector<4x1xf32>
    %230 = vector.broadcast %229 : vector<4x1xf32> to vector<4x128xf32>
    %231 = arith.addf %228, %230 : vector<4x128xf32>
    %c0_12 = arith.constant 0 : index
    %c0_13 = arith.constant 0 : index
    %c0_14 = arith.constant 0 : index
    %232 = vector.load %arg7[%c0_12, %c0_13, %c0_14] : memref<1x4x128xf32, #tpu.memory_space<vmem>>, vector<1x4x128xf32>
    %233 = vector.shape_cast %232 : vector<1x4x128xf32> to vector<4x128xf32>
    %234 = vector.shape_cast %231 : vector<4x128xf32> to vector<1x4x128xf32>
    tpu.vector_store %arg7[%c0_12, %c0_13, %c0_14], %234 {strides = array<i32>} : memref<1x4x128xf32, #tpu.memory_space<vmem>>, vector<1x4x128xf32>,
    return
  }
  func.func @transform_0(%arg0: i32, %arg1: i32) -> (i32, i32, i32) {
    %c0_i32 = arith.constant 0 : i32
    %c0_i32_0 = arith.constant 0 : i32
    return %arg1, %c0_i32, %arg0 : i32, i32, i32
  }
  func.func @transform_1(%arg0: i32, %arg1: i32) -> (i32, i32) {
    %c0_i32 = arith.constant 0 : i32
    %c0_i32_0 = arith.constant 0 : i32
    %c0_i32_1 = arith.constant 0 : i32
    return %c0_i32, %c0_i32_0 : i32, i32
  }
  func.func @transform_2(%arg0: i32, %arg1: i32) -> (i32, i32) {
    %c0_i32 = arith.constant 0 : i32
    %c0_i32_0 = arith.constant 0 : i32
    %c0_i32_1 = arith.constant 0 : i32
    return %c0_i32, %c0_i32_0 : i32, i32
  }
  func.func @transform_3(%arg0: i32, %arg1: i32) -> (i32, i32) {
    %c0_i32 = arith.constant 0 : i32
    %c0_i32_0 = arith.constant 0 : i32
    %c0_i32_1 = arith.constant 0 : i32
    return %c0_i32, %c0_i32_0 : i32, i32
  }
  func.func @transform_4(%arg0: i32, %arg1: i32) -> (i32, i32) {
    %c0_i32 = arith.constant 0 : i32
    %c0_i32_0 = arith.constant 0 : i32
    %c0_i32_1 = arith.constant 0 : i32
    return %c0_i32, %c0_i32_0 : i32, i32
  }
  func.func @transform_5(%arg0: i32, %arg1: i32) -> (i32, i32, i32) {
    %c0_i32 = arith.constant 0 : i32
    %c0_i32_0 = arith.constant 0 : i32
    return %arg1, %c0_i32, %arg0 : i32, i32, i32
  }
}

</mosaic_0001>

<llo_original>
// kernel: tpu_custom_call.1
$region0: #{tpu_custom_call.1}
  #allocation0 [shape = 'u32[]', space=smem, size = 0x4, offset = 0x4, fixed_abs, tag = 'smem constant byte address 0x4 - core index']
  #allocation1 [shape = 'u32[144,128]{1,0:T(1,128)}', space=vmem, size = 0x12000, scoped, tag = 'internal scratch']
  %s0 = inlined_call_operand.vmem [shape: f32[1,4,128], index: 0, kind: input, shape index: {}]
  %s1 = inlined_call_operand.vmem [shape: f32[32,4], index: 1, kind: input, shape index: {}]
  %s2 = inlined_call_operand.vmem [shape: f32[32,1], index: 2, kind: input, shape index: {}]
  %s3 = inlined_call_operand.vmem [shape: f32[4,32], index: 3, kind: input, shape index: {}]
  %s4 = inlined_call_operand.vmem [shape: f32[4,1], index: 4, kind: input, shape index: {}]
  %s5 = inlined_call_operand.hbm [shape: f32[1,4,128], index: 5, kind: output, shape index: {}]
  %s6 = sld [smem:[#allocation0]]
  $region30: #{tpu_custom_call.1} parent=0
    _
  %s8 = ssub.s32 1, %s6
  %s9 = scalar_select 0, %s8, %s6
  $region1: #{tpu_custom_call.1} parent=0
    #allocation2 [shape = 'u8[2048]{0}', space=vmem, size = 0x800, scoped, tag = 'output window, operand 0, single buffered']
    #allocation3 [shape = 's32[1]{0}', space=sflag, size = 0x4, scoped, tag = 'scoped memory for tpu_custom_call.1']
    %10 = vsyncpa [#allocation3], 0
    // Predicated region
    $region2: #{tpu_custom_call.1} parent=1 // pred_check
      _
    $region3: #{tpu_custom_call.1} parent=1 // pred_check_branch
      %12 = sbr.rel (0) target = $region5
    $region4: #{tpu_custom_call.1} parent=1 // pred_region
      _
    $region5: #{tpu_custom_call.1} parent=1 // pred_fallthru
      _
    // Predicated region
    $region6: #{tpu_custom_call.1} parent=1 // pred_check
      _
    $region7: #{tpu_custom_call.1} parent=1 // pred_check_branch
      %14 = sbr.rel (0) target = $region9
    $region8: #{tpu_custom_call.1} parent=1 // pred_region
      _
    $region9: #{tpu_custom_call.1} parent=1 // pred_fallthru
      _
    // Predicated region
    $region10: #{tpu_custom_call.1} parent=1 // pred_check
      _
    $region11: #{tpu_custom_call.1} parent=1 // pred_check_branch
      %16 = sbr.rel (0) target = $region13
    $region12: #{tpu_custom_call.1} parent=1 // pred_region
      _
    $region13: #{tpu_custom_call.1} parent=1 // pred_fallthru
      _
    // Predicated region
    $region14: #{tpu_custom_call.1} parent=1 // pred_check
      _
    $region15: #{tpu_custom_call.1} parent=1 // pred_check_branch
      %18 = sbr.rel (0) target = $region17
    $region16: #{tpu_custom_call.1} parent=1 // pred_region
      _
    $region17: #{tpu_custom_call.1} parent=1 // pred_fallthru
      _
    // Predicated region
    $region18: #{tpu_custom_call.1} parent=1 // pred_check
      _
    $region19: #{tpu_custom_call.1} parent=1 // pred_check_branch
      %20 = sbr.rel (0) target = $region21
    $region20: #{tpu_custom_call.1} parent=1 // pred_region
      _
    $region21: #{tpu_custom_call.1} parent=1 // pred_fallthru
      _
    %v21 = vld [vmem:[%s0] sm:$0xf]
    %v22 = vld [vmem:[%s1] sm:$0xff]
    %v23 = vld [vmem:[%s1 + $0x8] sm:$0xff]
    %v24 = vld [vmem:[%s1 + $0x10] sm:$0xff]
    %v25 = vld [vmem:[%s1 + $0x18] sm:$0xff]
    %27 = vset.pattern.permute.xlu0 0
    %28 = vperm.xlu0 %27, %v22
    %v29 = vpop.permute.xlu0 %28
    %32 = vset.pattern.permute.xlu0 0
    %33 = vperm.xlu0 %32, %v23
    %v34 = vpop.permute.xlu0 %33
    %37 = vset.pattern.permute.xlu0 0
    %38 = vperm.xlu0 %37, %v24
    %v39 = vpop.permute.xlu0 %38
    %42 = vset.pattern.permute.xlu0 0
    %43 = vperm.xlu0 %42, %v25
    %v44 = vpop.permute.xlu0 %43
    %v46 = vlaneseq
    %v47 = vshrl.u32 %v46, 7
    %v48 = vsub.s32 0, %v47
    %v49 = vrot.slane %v21, %v48
    %v50 = vmul.f32 %v29, %v49
    %v51 = vmul.f32 %v34, %v49
    %v52 = vmul.f32 %v39, %v49
    %v53 = vmul.f32 %v44, %v49
    %54 = vset.pattern.permute.xlu0 1
    %55 = vperm.xlu0 %54, %v22
    %v56 = vpop.permute.xlu0 %55
    %58 = vset.pattern.permute.xlu0 1
    %59 = vperm.xlu0 %58, %v23
    %v60 = vpop.permute.xlu0 %59
    %62 = vset.pattern.permute.xlu0 1
    %63 = vperm.xlu0 %62, %v24
    %v64 = vpop.permute.xlu0 %63
    %66 = vset.pattern.permute.xlu0 1
    %67 = vperm.xlu0 %66, %v25
    %v68 = vpop.permute.xlu0 %67
    %v70 = vlaneseq
    %v71 = vshrl.u32 %v70, 7
    %v72 = vsub.s32 1, %v71
    %v73 = vrot.slane %v21, %v72
    %v74 = vmul.f32 %v56, %v73
    %v75 = vmul.f32 %v60, %v73
    %v76 = vmul.f32 %v64, %v73
    %v77 = vmul.f32 %v68, %v73
    %v78 = vadd.f32 %v50, %v74
    %v79 = vadd.f32 %v51, %v75
    %v80 = vadd.f32 %v52, %v76
    %v81 = vadd.f32 %v53, %v77
    %82 = vset.pattern.permute.xlu0 2
    %83 = vperm.xlu0 %82, %v22
    %v84 = vpop.permute.xlu0 %83
    %86 = vset.pattern.permute.xlu0 2
    %87 = vperm.xlu0 %86, %v23
    %v88 = vpop.permute.xlu0 %87
    %90 = vset.pattern.permute.xlu0 2
    %91 = vperm.xlu0 %90, %v24
    %v92 = vpop.permute.xlu0 %91
    %94 = vset.pattern.permute.xlu0 2
    %95 = vperm.xlu0 %94, %v25
    %v96 = vpop.permute.xlu0 %95
    %v98 = vlaneseq
    %v99 = vshrl.u32 %v98, 7
    %v100 = vsub.s32 2, %v99
    %v101 = vrot.slane %v21, %v100
    %v102 = vmul.f32 %v84, %v101
    %v103 = vmul.f32 %v88, %v101
    %v104 = vmul.f32 %v92, %v101
    %v105 = vmul.f32 %v96, %v101
    %v106 = vadd.f32 %v78, %v102
    %v107 = vadd.f32 %v79, %v103
    %v108 = vadd.f32 %v80, %v104
    %v109 = vadd.f32 %v81, %v105
    %110 = vset.pattern.permute.xlu0 3
    %111 = vperm.xlu0 %110, %v22
    %v112 = vpop.permute.xlu0 %111
    %114 = vset.pattern.permute.xlu0 3
    %115 = vperm.xlu0 %114, %v23
    %v116 = vpop.permute.xlu0 %115
    %118 = vset.pattern.permute.xlu0 3
    %119 = vperm.xlu0 %118, %v24
    %v120 = vpop.permute.xlu0 %119
    %122 = vset.pattern.permute.xlu0 3
    %123 = vperm.xlu0 %122, %v25
    %v124 = vpop.permute.xlu0 %123
    %v126 = vlaneseq
    %v127 = vshrl.u32 %v126, 7
    %v128 = vsub.s32 3, %v127
    %v129 = vrot.slane %v21, %v128
    %v130 = vmul.f32 %v112, %v129
    %v131 = vmul.f32 %v116, %v129
    %v132 = vmul.f32 %v120, %v129
    %v133 = vmul.f32 %v124, %v129
    %v134 = vadd.f32 %v106, %v130
    %v135 = vadd.f32 %v107, %v131
    %v136 = vadd.f32 %v108, %v132
    %v137 = vadd.f32 %v109, %v133
    %v138 = vld [vmem:[%s2] sm:$0xff]
    %v139 = vld [vmem:[%s2 + $0x8] sm:$0xff]
    %v140 = vld [vmem:[%s2 + $0x10] sm:$0xff]
    %v141 = vld [vmem:[%s2 + $0x18] sm:$0xff]
    %143 = vset.pattern.permute.xlu0 0
    %144 = vperm.xlu0 %143, %v138
    %v145 = vpop.permute.xlu0 %144
    %148 = vset.pattern.permute.xlu0 0
    %149 = vperm.xlu0 %148, %v139
    %v150 = vpop.permute.xlu0 %149
    %153 = vset.pattern.permute.xlu0 0
    %154 = vperm.xlu0 %153, %v140
    %v155 = vpop.permute.xlu0 %154
    %158 = vset.pattern.permute.xlu0 0
    %159 = vperm.xlu0 %158, %v141
    %v160 = vpop.permute.xlu0 %159
    %v162 = vadd.f32 %v134, %v145
    %v163 = vadd.f32 %v135, %v150
    %v164 = vadd.f32 %v136, %v155
    %v165 = vadd.f32 %v137, %v160
    %v166 = vmul.f32 %v162, 0.5
    %v167 = vmul.f32 %v163, 0.5
    %v168 = vmul.f32 %v164, 0.5
    %v169 = vmul.f32 %v165, 0.5
    %v170 = vmul.f32 %v162, 0.70710677
    %v171 = vmul.f32 %v163, 0.70710677
    %v172 = vmul.f32 %v164, 0.70710677
    %v173 = vmul.f32 %v165, 0.70710677
    %v174 = verf.f32.pop %v170
    %v175 = verf.f32.pop %v171
    %v176 = verf.f32.pop %v172
    %v177 = verf.f32.pop %v173
    %v178 = vadd.f32 %v174, 1.0
    %v179 = vadd.f32 %v175, 1.0
    %v180 = vadd.f32 %v176, 1.0
    %v181 = vadd.f32 %v177, 1.0
    %v182 = vmul.f32 %v166, %v178
    %v183 = vmul.f32 %v167, %v179
    %v184 = vmul.f32 %v168, %v180
    %v185 = vmul.f32 %v169, %v181
    %v186 = vld [vmem:[%s3] sm:$0xf]
    %188 = vset.pattern.permute.xlu0 0
    %189 = vperm.xlu0 %188, %v186
    %v190 = vpop.permute.xlu0 %189
    %v192 = vlaneseq
    %v193 = vshrl.u32 %v192, 7
    %v194 = vsub.s32 0, %v193
    %v195 = vrot.slane %v182, %v194
    %v196 = vmul.f32 %v190, %v195
    %197 = vset.pattern.permute.xlu0 1
    %198 = vperm.xlu0 %197, %v186
    %v199 = vpop.permute.xlu0 %198
    %v201 = vlaneseq
    %v202 = vshrl.u32 %v201, 7
    %v203 = vsub.s32 1, %v202
    %v204 = vrot.slane %v182, %v203
    %v205 = vmul.f32 %v199, %v204
    %v206 = vadd.f32 %v196, %v205
    %207 = vset.pattern.permute.xlu0 2
    %208 = vperm.xlu0 %207, %v186
    %v209 = vpop.permute.xlu0 %208
    %v211 = vlaneseq
    %v212 = vshrl.u32 %v211, 7
    %v213 = vsub.s32 2, %v212
    %v214 = vrot.slane %v182, %v213
    %v215 = vmul.f32 %v209, %v214
    %v216 = vadd.f32 %v206, %v215
    %217 = vset.pattern.permute.xlu0 3
    %218 = vperm.xlu0 %217, %v186
    %v219 = vpop.permute.xlu0 %218
    %v221 = vlaneseq
    %v222 = vshrl.u32 %v221, 7
    %v223 = vsub.s32 3, %v222
    %v224 = vrot.slane %v182, %v223
    %v225 = vmul.f32 %v219, %v224
    %v226 = vadd.f32 %v216, %v225
    %227 = vset.pattern.permute.xlu0 4
    %228 = vperm.xlu0 %227, %v186
    %v229 = vpop.permute.xlu0 %228
    %v231 = vlaneseq
    %v232 = vshrl.u32 %v231, 7
    %v233 = vsub.s32 4, %v232
    %v234 = vrot.slane %v182, %v233
    %v235 = vmul.f32 %v229, %v234
    %v236 = vadd.f32 %v226, %v235
    %237 = vset.pattern.permute.xlu0 5
    %238 = vperm.xlu0 %237, %v186
    %v239 = vpop.permute.xlu0 %238
    %v241 = vlaneseq
    %v242 = vshrl.u32 %v241, 7
    %v243 = vsub.s32 5, %v242
    %v244 = vrot.slane %v182, %v243
    %v245 = vmul.f32 %v239, %v244
    %v246 = vadd.f32 %v236, %v245
    %247 = vset.pattern.permute.xlu0 6
    %248 = vperm.xlu0 %247, %v186
    %v249 = vpop.permute.xlu0 %248
    %v251 = vlaneseq
    %v252 = vshrl.u32 %v251, 7
    %v253 = vsub.s32 6, %v252
    %v254 = vrot.slane %v182, %v253
    %v255 = vmul.f32 %v249, %v254
    %v256 = vadd.f32 %v246, %v255
    %257 = vset.pattern.permute.xlu0 7
    %258 = vperm.xlu0 %257, %v186
    %v259 = vpop.permute.xlu0 %258
    %v261 = vlaneseq
    %v262 = vshrl.u32 %v261, 7
    %v263 = vsub.s32 7, %v262
    %v264 = vrot.slane %v182, %v263
    %v265 = vmul.f32 %v259, %v264
    %v266 = vadd.f32 %v256, %v265
    %267 = vset.pattern.permute.xlu0 8
    %268 = vperm.xlu0 %267, %v186
    %v269 = vpop.permute.xlu0 %268
    %v271 = vlaneseq
    %v272 = vshrl.u32 %v271, 7
    %v273 = vsub.s32 0, %v272
    %v274 = vrot.slane %v183, %v273
    %v275 = vmul.f32 %v269, %v274
    %v276 = vadd.f32 %v266, %v275
    %277 = vset.pattern.permute.xlu0 9
    %278 = vperm.xlu0 %277, %v186
    %v279 = vpop.permute.xlu0 %278
    %v281 = vlaneseq
    %v282 = vshrl.u32 %v281, 7
    %v283 = vsub.s32 1, %v282
    %v284 = vrot.slane %v183, %v283
    %v285 = vmul.f32 %v279, %v284
    %v286 = vadd.f32 %v276, %v285
    %287 = vset.pattern.permute.xlu0 10
    %288 = vperm.xlu0 %287, %v186
    %v289 = vpop.permute.xlu0 %288
    %v291 = vlaneseq
    %v292 = vshrl.u32 %v291, 7
    %v293 = vsub.s32 2, %v292
    %v294 = vrot.slane %v183, %v293
    %v295 = vmul.f32 %v289, %v294
    %v296 = vadd.f32 %v286, %v295
    %297 = vset.pattern.permute.xlu0 11
    %298 = vperm.xlu0 %297, %v186
    %v299 = vpop.permute.xlu0 %298
    %v301 = vlaneseq
    %v302 = vshrl.u32 %v301, 7
    %v303 = vsub.s32 3, %v302
    %v304 = vrot.slane %v183, %v303
    %v305 = vmul.f32 %v299, %v304
    %v306 = vadd.f32 %v296, %v305
    %307 = vset.pattern.permute.xlu0 12
    %308 = vperm.xlu0 %307, %v186
    %v309 = vpop.permute.xlu0 %308
    %v311 = vlaneseq
    %v312 = vshrl.u32 %v311, 7
    %v313 = vsub.s32 4, %v312
    %v314 = vrot.slane %v183, %v313
    %v315 = vmul.f32 %v309, %v314
    %v316 = vadd.f32 %v306, %v315
    %317 = vset.pattern.permute.xlu0 13
    %318 = vperm.xlu0 %317, %v186
    %v319 = vpop.permute.xlu0 %318
    %v321 = vlaneseq
    %v322 = vshrl.u32 %v321, 7
    %v323 = vsub.s32 5, %v322
    %v324 = vrot.slane %v183, %v323
    %v325 = vmul.f32 %v319, %v324
    %v326 = vadd.f32 %v316, %v325
    %327 = vset.pattern.permute.xlu0 14
    %328 = vperm.xlu0 %327, %v186
    %v329 = vpop.permute.xlu0 %328
    %v331 = vlaneseq
    %v332 = vshrl.u32 %v331, 7
    %v333 = vsub.s32 6, %v332
    %v334 = vrot.slane %v183, %v333
    %v335 = vmul.f32 %v329, %v334
    %v336 = vadd.f32 %v326, %v335
    %337 = vset.pattern.permute.xlu0 15
    %338 = vperm.xlu0 %337, %v186
    %v339 = vpop.permute.xlu0 %338
    %v341 = vlaneseq
    %v342 = vshrl.u32 %v341, 7
    %v343 = vsub.s32 7, %v342
    %v344 = vrot.slane %v183, %v343
    %v345 = vmul.f32 %v339, %v344
    %v346 = vadd.f32 %v336, %v345
    %347 = vset.pattern.permute.xlu0 16
    %348 = vperm.xlu0 %347, %v186
    %v349 = vpop.permute.xlu0 %348
    %v351 = vlaneseq
    %v352 = vshrl.u32 %v351, 7
    %v353 = vsub.s32 0, %v352
    %v354 = vrot.slane %v184, %v353
    %v355 = vmul.f32 %v349, %v354
    %v356 = vadd.f32 %v346, %v355
    %357 = vset.pattern.permute.xlu0 17
    %358 = vperm.xlu0 %357, %v186
    %v359 = vpop.permute.xlu0 %358
    %v361 = vlaneseq
    %v362 = vshrl.u32 %v361, 7
    %v363 = vsub.s32 1, %v362
    %v364 = vrot.slane %v184, %v363
    %v365 = vmul.f32 %v359, %v364
    %v366 = vadd.f32 %v356, %v365
    %367 = vset.pattern.permute.xlu0 18
    %368 = vperm.xlu0 %367, %v186
    %v369 = vpop.permute.xlu0 %368
    %v371 = vlaneseq
    %v372 = vshrl.u32 %v371, 7
    %v373 = vsub.s32 2, %v372
    %v374 = vrot.slane %v184, %v373
    %v375 = vmul.f32 %v369, %v374
    %v376 = vadd.f32 %v366, %v375
    %377 = vset.pattern.permute.xlu0 19
    %378 = vperm.xlu0 %377, %v186
    %v379 = vpop.permute.xlu0 %378
    %v381 = vlaneseq
    %v382 = vshrl.u32 %v381, 7
    %v383 = vsub.s32 3, %v382
    %v384 = vrot.slane %v184, %v383
    %v385 = vmul.f32 %v379, %v384
    %v386 = vadd.f32 %v376, %v385
    %387 = vset.pattern.permute.xlu0 20
    %388 = vperm.xlu0 %387, %v186
    %v389 = vpop.permute.xlu0 %388
    %v391 = vlaneseq
    %v392 = vshrl.u32 %v391, 7
    %v393 = vsub.s32 4, %v392
    %v394 = vrot.slane %v184, %v393
    %v395 = vmul.f32 %v389, %v394
    %v396 = vadd.f32 %v386, %v395
    %397 = vset.pattern.permute.xlu0 21
    %398 = vperm.xlu0 %397, %v186
    %v399 = vpop.permute.xlu0 %398
    %v401 = vlaneseq
    %v402 = vshrl.u32 %v401, 7
    %v403 = vsub.s32 5, %v402
    %v404 = vrot.slane %v184, %v403
    %v405 = vmul.f32 %v399, %v404
    %v406 = vadd.f32 %v396, %v405
    %407 = vset.pattern.permute.xlu0 22
    %408 = vperm.xlu0 %407, %v186
    %v409 = vpop.permute.xlu0 %408
    %v411 = vlaneseq
    %v412 = vshrl.u32 %v411, 7
    %v413 = vsub.s32 6, %v412
    %v414 = vrot.slane %v184, %v413
    %v415 = vmul.f32 %v409, %v414
    %v416 = vadd.f32 %v406, %v415
    %417 = vset.pattern.permute.xlu0 23
    %418 = vperm.xlu0 %417, %v186
    %v419 = vpop.permute.xlu0 %418
    %v421 = vlaneseq
    %v422 = vshrl.u32 %v421, 7
    %v423 = vsub.s32 7, %v422
    %v424 = vrot.slane %v184, %v423
    %v425 = vmul.f32 %v419, %v424
    %v426 = vadd.f32 %v416, %v425
    %427 = vset.pattern.permute.xlu0 24
    %428 = vperm.xlu0 %427, %v186
    %v429 = vpop.permute.xlu0 %428
    %v431 = vlaneseq
    %v432 = vshrl.u32 %v431, 7
    %v433 = vsub.s32 0, %v432
    %v434 = vrot.slane %v185, %v433
    %v435 = vmul.f32 %v429, %v434
    %v436 = vadd.f32 %v426, %v435
    %437 = vset.pattern.permute.xlu0 25
    %438 = vperm.xlu0 %437, %v186
    %v439 = vpop.permute.xlu0 %438
    %v441 = vlaneseq
    %v442 = vshrl.u32 %v441, 7
    %v443 = vsub.s32 1, %v442
    %v444 = vrot.slane %v185, %v443
    %v445 = vmul.f32 %v439, %v444
    %v446 = vadd.f32 %v436, %v445
    %447 = vset.pattern.permute.xlu0 26
    %448 = vperm.xlu0 %447, %v186
    %v449 = vpop.permute.xlu0 %448
    %v451 = vlaneseq
    %v452 = vshrl.u32 %v451, 7
    %v453 = vsub.s32 2, %v452
    %v454 = vrot.slane %v185, %v453
    %v455 = vmul.f32 %v449, %v454
    %v456 = vadd.f32 %v446, %v455
    %457 = vset.pattern.permute.xlu0 27
    %458 = vperm.xlu0 %457, %v186
    %v459 = vpop.permute.xlu0 %458
    %v461 = vlaneseq
    %v462 = vshrl.u32 %v461, 7
    %v463 = vsub.s32 3, %v462
    %v464 = vrot.slane %v185, %v463
    %v465 = vmul.f32 %v459, %v464
    %v466 = vadd.f32 %v456, %v465
    %467 = vset.pattern.permute.xlu0 28
    %468 = vperm.xlu0 %467, %v186
    %v469 = vpop.permute.xlu0 %468
    %v471 = vlaneseq
    %v472 = vshrl.u32 %v471, 7
    %v473 = vsub.s32 4, %v472
    %v474 = vrot.slane %v185, %v473
    %v475 = vmul.f32 %v469, %v474
    %v476 = vadd.f32 %v466, %v475
    %477 = vset.pattern.permute.xlu0 29
    %478 = vperm.xlu0 %477, %v186
    %v479 = vpop.permute.xlu0 %478
    %v481 = vlaneseq
    %v482 = vshrl.u32 %v481, 7
    %v483 = vsub.s32 5, %v482
    %v484 = vrot.slane %v185, %v483
    %v485 = vmul.f32 %v479, %v484
    %v486 = vadd.f32 %v476, %v485
    %487 = vset.pattern.permute.xlu0 30
    %488 = vperm.xlu0 %487, %v186
    %v489 = vpop.permute.xlu0 %488
    %v491 = vlaneseq
    %v492 = vshrl.u32 %v491, 7
    %v493 = vsub.s32 6, %v492
    %v494 = vrot.slane %v185, %v493
    %v495 = vmul.f32 %v489, %v494
    %v496 = vadd.f32 %v486, %v495
    %497 = vset.pattern.permute.xlu0 31
    %498 = vperm.xlu0 %497, %v186
    %v499 = vpop.permute.xlu0 %498
    %v501 = vlaneseq
    %v502 = vshrl.u32 %v501, 7
    %v503 = vsub.s32 7, %v502
    %v504 = vrot.slane %v185, %v503
    %v505 = vmul.f32 %v499, %v504
    %v506 = vadd.f32 %v496, %v505
    %v507 = vld [vmem:[%s4] sm:$0xf]
    %509 = vset.pattern.permute.xlu0 0
    %510 = vperm.xlu0 %509, %v507
    %v511 = vpop.permute.xlu0 %510
    %v513 = vadd.f32 %v506, %v511
    %514 = vst [vmem:[#allocation2] sm:$0xf] %v513
    // Predicated region
    $region22: #{tpu_custom_call.1} parent=1 // pred_check
      _
    $region23: #{tpu_custom_call.1} parent=1 // pred_check_branch
      %516 = sbr.rel (0) target = $region25
    $region24: #{tpu_custom_call.1} parent=1 // pred_region
      %s518 = ssub.s32 64, 64
      %519 = vsyncadd [#allocation3], %s518
      %s521 = sshll.u32 [#allocation2], 4
      %s522 = int_to_ptr.vmem [resolvable:$true] %s521
      %524 = dma.vmem_to_hbm [thread:$0]  %s522, 64, %s5, [#allocation3]
    $region25: #{tpu_custom_call.1} parent=1 // pred_fallthru
      _
    // Predicated region
    $region26: #{tpu_custom_call.1} parent=1 // pred_check
      _
    $region27: #{tpu_custom_call.1} parent=1 // pred_check_branch
      %526 = sbr.rel (0) target = $region29
    $region28: #{tpu_custom_call.1} parent=1 // pred_region
      %527 = dma.done [#allocation3], 64
    $region29: #{tpu_custom_call.1} parent=1 // pred_fallthru
      _
    %528 = vsyncpa [#allocation3], 1

</llo_original>
